<compile_context>
chip_gen: v7x
topology: tpu7x:2x2x1
jax: 0.10.0
libtpu: 0.0.40
codegen_flags: <defaults>
</compile_context>

<pallas_src>
import jax
import jax.numpy as jnp
from jax.experimental import pallas as pl
from jax.experimental.pallas import tpu as pltpu

ALPHA_SHAPE = (2, 512 // 8)             # (2, 64), as in the PyTorch __init__
N_EXPAND = 512
REPEAT = N_EXPAND // ALPHA_SHAPE[1]     # = 8, uniform multiplicity of the index
BATCH_TILE = 8                          # batch rows per grid step (sublane-aligned)

# Folded polynomial coefficients of f([32, w0, w1]) (see header).
_C0 = 27.0 * 32.0 + 512.0 * 10.0 + 2.0 * 32.0       # 6048.0
_CW0 = 2.0 * 32.0 + 2.0 * 49.0                       # 162.0
_CW1 = 2.0 * 49.0                                    # 98.0
_CQ = 25.0 / 16.0 + 15.0 * 41.0 / 16.0               # 40.0


def _poly(w0, w1):
    """ff = f([32, w0, w1]) / 1e6 with constants pre-folded."""
    return (_C0 + _CW0 * w0 + _CW1 * w1 + 2.0 * (w0 * w1)
            + _CQ * (w0 * w0 + w1 * w1)) * 1e-6


# -----------------------------------------------------------------------------
# Single-instance kernel (faithful to the module's forward(): one alpha, one
# scalar loss).  No grid; (1,1) SMEM scalar output.
# -----------------------------------------------------------------------------
def _model_kernel(alpha_ref, out_ref):
    # alpha_ref: (2, 64) f32 in VMEM ; out_ref: (1, 1) f32 in SMEM
    x = alpha_ref[...]

    # relu(2*sigmoid(x) - 1) == max(tanh(x/2), 0)
    r = jnp.maximum(jnp.tanh(0.5 * x), 0.0)

    # One lane reduction -> (2,1); gather fold: sum(expanded) == 8 * sum(orig).
    s = jnp.sum(r, axis=-1, keepdims=True) * jnp.float32(REPEAT)
    w0 = jnp.sum(s[0:1, :])     # trivial (1,1)->scalar extracts
    w1 = jnp.sum(s[1:2, :])

    ff = _poly(w0, w1)
    out_ref[0, 0] = (ff - 2.0) ** 2


def model_forward(alpha):
    """alpha: (2, 64) f32 -> scalar f32 (exactly the module's forward())."""
    out = pl.pallas_call(
        _model_kernel,
        out_shape=jax.ShapeDtypeStruct((1, 1), jnp.float32),
        in_specs=[pl.BlockSpec(memory_space=pltpu.MemorySpace.VMEM)],
        out_specs=pl.BlockSpec(memory_space=pltpu.MemorySpace.SMEM),
        cost_estimate=pl.CostEstimate(
            flops=600, transcendentals=128, bytes_accessed=2 * 64 * 4 + 4),
    )(alpha)
    return out[0, 0]


# -----------------------------------------------------------------------------
# Batched kernel: evaluates the same loss for B independent alphas in one call
# (amortizes the per-pallas_call fixed overhead).  Input is presented
# lane-dense as (B, 128): row b = [alpha_b[0, :64] | alpha_b[1, :64]].
# -----------------------------------------------------------------------------
def _model_kernel_batched(alpha_ref, out_ref):
    # alpha_ref: (BATCH_TILE, 128) f32 VMEM ; out_ref: (BATCH_TILE, 1) f32 VMEM
    x = alpha_ref[...]
    r = jnp.maximum(jnp.tanh(0.5 * x), 0.0)
    rep = jnp.float32(REPEAT)
    w0 = rep * jnp.sum(r[:, :ALPHA_SHAPE[1]], axis=-1, keepdims=True)   # (TB,1)
    w1 = rep * jnp.sum(r[:, ALPHA_SHAPE[1]:], axis=-1, keepdims=True)   # (TB,1)
    ff = _poly(w0, w1)
    out_ref[...] = (ff - 2.0) ** 2


def model_forward_batched(alphas):
    """alphas: (B, 2, 64) f32 -> (B,) f32 of per-problem losses."""
    b = alphas.shape[0]
    bp = ((b + BATCH_TILE - 1) // BATCH_TILE) * BATCH_TILE
    flat = alphas.reshape(b, ALPHA_SHAPE[0] * ALPHA_SHAPE[1])   # (B, 128)
    if bp != b:
        flat = jnp.pad(flat, ((0, bp - b), (0, 0)))             # pad rows are 0s

    out = pl.pallas_call(
        _model_kernel_batched,
        out_shape=jax.ShapeDtypeStruct((bp, 1), jnp.float32),
        grid_spec=pltpu.PrefetchScalarGridSpec(
            num_scalar_prefetch=0,
            grid=(bp // BATCH_TILE,),
            in_specs=[pl.BlockSpec((BATCH_TILE, 128), lambda i: (i, 0))],
            out_specs=pl.BlockSpec((BATCH_TILE, 1), lambda i: (i, 0)),
        ),
        compiler_params=pltpu.CompilerParams(
            dimension_semantics=("parallel",)),
        cost_estimate=pl.CostEstimate(
            flops=600 * bp, transcendentals=128 * bp,
            bytes_accessed=bp * (128 * 4 + 4)),
    )(flat)
    return out[:b, 0]


# -----------------------------------------------------------------------------
# Plain-JAX reference mirroring the PyTorch forward (with the real gather).
# -----------------------------------------------------------------------------
def _reference(alpha):
    index = jnp.array([i // REPEAT for i in range(N_EXPAND)], dtype=jnp.int32)
    a = jax.nn.sigmoid(alpha)
    a = jnp.take(a, index, axis=-1)
    w_hat = jnp.sum(jax.nn.relu(2.0 * a - 1.0), axis=-1)
    w = [jnp.float32(32.0), w_hat[0], w_hat[1]]
    ff = (27.0 * w[0]
          + sum(2.0 * w[i] * w[i + 1]
                + 25.0 / 16.0 * w[i + 1] ** 2
                + 15.0 * 41.0 / 16.0 * w[i + 1] ** 2
                for i in range(len(w) - 1))
          + 512.0 * 10.0
          + 2.0 * (w[0] + 49.0 * w[1] + 49.0 * w[2])) / 1_000_000.0
    return (ff - 2.0) ** 2


if __name__ == "__main__":
    key = jax.random.PRNGKey(0)
    k1, k2 = jax.random.split(key)

    # Deterministic synthetic parameter, matching torch init: 0.001 * randn(2, 64)
    alpha = 0.001 * jax.random.normal(k1, ALPHA_SHAPE, dtype=jnp.float32)

    # Single-instance (module-faithful) path.
    out = jax.block_until_ready(model_forward(alpha))
    ref = jax.block_until_ready(_reference(alpha))
    assert out.shape == () and out.dtype == jnp.float32
    assert jnp.allclose(out, ref, rtol=1e-5, atol=1e-6), (out, ref)

    # Batched path (amortized per-call overhead; "parallel" batch grid axis).
    B = 16
    alphas = 0.001 * jax.random.normal(k2, (B,) + ALPHA_SHAPE, dtype=jnp.float32)
    outs = jax.block_until_ready(model_forward_batched(alphas))
    refs = jax.block_until_ready(jax.vmap(_reference)(alphas))
    assert outs.shape == (B,) and outs.dtype == jnp.float32
    assert jnp.allclose(outs, refs, rtol=1e-5, atol=1e-6), (outs, refs)

    print("KERNEL_OK")
</pallas_src>

<mosaic_0001>
module attributes {stable_mosaic.version = 11 : i64} {
  func.func @_model_kernel(%arg0: memref<2x64xf32, #tpu.memory_space<vmem>>, %arg1: memref<1x1xf32, #tpu.memory_space<smem>>) attributes {dimension_semantics = [], scalar_prefetch = 0 : i64, scratch_operands = 0 : i64, tpu.core_type = #tpu.core_type<tc>} {
    %c0 = arith.constant 0 : index
    %c0_0 = arith.constant 0 : index
    %0 = vector.load %arg0[%c0, %c0_0] : memref<2x64xf32, #tpu.memory_space<vmem>>, vector<2x64xf32>
    %cst = arith.constant 5.000000e-01 : f32
    %1 = vector.broadcast %cst : f32 to vector<2x64xf32>
    %2 = arith.mulf %1, %0 : vector<2x64xf32>
    %3 = math.tanh %2 : vector<2x64xf32>
    %cst_1 = arith.constant 0.000000e+00 : f32
    %4 = vector.broadcast %cst_1 : f32 to vector<2x64xf32>
    %5 = arith.maximumf %3, %4 : vector<2x64xf32>
    %cst_2 = arith.constant dense<0.000000e+00> : vector<2xf32>
    %6 = vector.multi_reduction <add>, %5, %cst_2 [1] : vector<2x64xf32> to vector<2xf32>
    %7 = vector.shape_cast %6 : vector<2xf32> to vector<2x1xf32>
    %cst_3 = arith.constant 8.000000e+00 : f32
    %8 = vector.broadcast %cst_3 : f32 to vector<2x1xf32>
    %9 = arith.mulf %7, %8 : vector<2x1xf32>
    %10 = vector.extract_strided_slice %9 {offsets = [0, 0], sizes = [1, 1], strides = [1, 1]} : vector<2x1xf32> to vector<1x1xf32>
    %11 = vector.shape_cast %10 : vector<1x1xf32> to vector<1x1x1xf32>
    %cst_4 = arith.constant dense<0.000000e+00> : vector<1xf32>
    %12 = vector.multi_reduction <add>, %11, %cst_4 [1, 2] : vector<1x1x1xf32> to vector<1xf32>
    %13 = vector.shape_cast %12 : vector<1xf32> to vector<1x1x1xf32>
    %14 = vector.extract %13[0, 0, 0] : f32 from vector<1x1x1xf32>
    %15 = vector.extract_strided_slice %9 {offsets = [1, 0], sizes = [1, 1], strides = [1, 1]} : vector<2x1xf32> to vector<1x1xf32>
    %16 = vector.shape_cast %15 : vector<1x1xf32> to vector<1x1x1xf32>
    %cst_5 = arith.constant dense<0.000000e+00> : vector<1xf32>
    %17 = vector.multi_reduction <add>, %16, %cst_5 [1, 2] : vector<1x1x1xf32> to vector<1xf32>
    %18 = vector.shape_cast %17 : vector<1xf32> to vector<1x1x1xf32>
    %19 = vector.extract %18[0, 0, 0] : f32 from vector<1x1x1xf32>
    %cst_6 = arith.constant 1.620000e+02 : f32
    %20 = arith.mulf %cst_6, %14 : f32
    %cst_7 = arith.constant 6.048000e+03 : f32
    %21 = arith.addf %cst_7, %20 : f32
    %cst_8 = arith.constant 9.800000e+01 : f32
    %22 = arith.mulf %cst_8, %19 : f32
    %23 = arith.addf %21, %22 : f32
    %24 = arith.mulf %14, %19 : f32
    %cst_9 = arith.constant 2.000000e+00 : f32
    %25 = arith.mulf %cst_9, %24 : f32
    %26 = arith.addf %23, %25 : f32
    %27 = arith.mulf %14, %14 : f32
    %28 = arith.mulf %19, %19 : f32
    %29 = arith.addf %27, %28 : f32
    %cst_10 = arith.constant 4.000000e+01 : f32
    %30 = arith.mulf %cst_10, %29 : f32
    %31 = arith.addf %26, %30 : f32
    %cst_11 = arith.constant 9.99999997E-7 : f32
    %32 = arith.mulf %31, %cst_11 : f32
    %cst_12 = arith.constant 2.000000e+00 : f32
    %33 = arith.subf %32, %cst_12 : f32
    %34 = arith.mulf %33, %33 : f32
    %c0_13 = arith.constant 0 : index
    %c0_14 = arith.constant 0 : index
    %35 = memref.load %arg1[%c0_13, %c0_14] : memref<1x1xf32, #tpu.memory_space<smem>>
    memref.store %34, %arg1[%c0_13, %c0_14] : memref<1x1xf32, #tpu.memory_space<smem>>
    return
  }
}

</mosaic_0001>

<llo_original>
// kernel: tpu_custom_call.1
$region0: #{tpu_custom_call.1}
  #allocation0 [shape = 'u32[]', space=smem, size = 0x4, offset = 0x4, fixed_abs, tag = 'smem constant byte address 0x4 - core index']
  #allocation1 [shape = 'u32[144,128]{1,0:T(1,128)}', space=vmem, size = 0x12000, scoped, tag = 'internal scratch']
  %s0 = inlined_call_operand.hbm [shape: f32[2,64], index: 0, kind: input, shape index: {}]
  %s1 = inlined_call_operand.hbm [shape: f32[1,1], index: 1, kind: output, shape index: {}]
  %s2 = sld [smem:[#allocation0]]
  $region18: #{tpu_custom_call.1} parent=0
    _
  %s4 = ssub.s32 1, %s2
  %s5 = scalar_select 0, %s4, %s2
  $region1: #{tpu_custom_call.1} parent=0
    #allocation2 [shape = 'u8[1024]{0}', space=vmem, size = 0x400, scoped, tag = 'input window, operand 0, single buffered']
    #allocation3 [shape = 's32[1]{0}', space=sflag, size = 0x4, scoped, tag = 'scoped memory for tpu_custom_call.1']
    #allocation4 [shape = 's32[1]{0}', space=sflag, size = 0x4, scoped, tag = 'scoped memory for tpu_custom_call.1']
    #allocation5 [shape = 'u8[512]{0}', space=smem, size = 0x200, scoped, tag = 'output window, operand 0, single buffered']
    %6 = vsyncpa [#allocation3], 0
    %7 = vsyncpa [#allocation4], 0
    // Predicated region
    $region2: #{tpu_custom_call.1} parent=1 // pred_check
      _
    $region3: #{tpu_custom_call.1} parent=1 // pred_check_branch
      %9 = sbr.rel (0) target = $region5
    $region4: #{tpu_custom_call.1} parent=1 // pred_region
      %s11 = ssub.s32 32, 32
      %12 = vsyncadd [#allocation3], %s11
      %s14 = sshll.u32 [#allocation2], 4
      %s15 = int_to_ptr.vmem [resolvable:$true] %s14
      %17 = dma.hbm_to_vmem [thread:$0]  %s0, 32, %s15, [#allocation3]
    $region5: #{tpu_custom_call.1} parent=1 // pred_fallthru
      _
    // Predicated region
    $region6: #{tpu_custom_call.1} parent=1 // pred_check
      _
    $region7: #{tpu_custom_call.1} parent=1 // pred_check_branch
      %19 = sbr.rel (0) target = $region9
    $region8: #{tpu_custom_call.1} parent=1 // pred_region
      %20 = dma.done [#allocation3], 32
    $region9: #{tpu_custom_call.1} parent=1 // pred_fallthru
      _
    %v21 = vld [vmem:[#allocation2] sm:$0x3]
    %v22 = vmul.f32 %v21, 0.5
    %v23 = vtanh.pop %v22
    %v24 = vmax.f32 %v23, 0.0
    %vm25 = vcmask 517120
    %v26 = vsel %vm25, %v24, 0.0
    %27 = vadd.xlane.f32.xlu0 %v26
    %v28 = vpop.xlane.xlu0 %27
    %v29 = vmul.f32 %v28, 8.0
    %v30 = vadd.f32 %v29, 0.0
    %s31 = vtos %v30
    %v33 = vrot.slane %v30, 1
    %s35 = vtos %v33
    %s36 = smul.f32 %s31, 162.0
    %s37 = sadd.f32 %s36, 6048.0
    %s38 = smul.f32 %s35, 98.0
    %s39 = sadd.f32 %s37, %s38
    %s40 = smul.f32 %s31, %s35
    %s41 = smul.f32 %s40, 2.0
    %s42 = sadd.f32 %s39, %s41
    %s43 = smul.f32 %s31, %s31
    %s44 = smul.f32 %s35, %s35
    %s45 = sadd.f32 %s43, %s44
    %s46 = smul.f32 %s45, 40.0
    %s47 = sadd.f32 %s42, %s46
    %s48 = smul.f32 %s47, 1e-06
    %s49 = ssub.f32 %s48, 2.0
    %s50 = smul.f32 %s49, %s49
    %s51 = scalar_lea.smem [#allocation5], 0
    %52 = sst [smem:[%s51]] %s50
    // Predicated region
    $region10: #{tpu_custom_call.1} parent=1 // pred_check
      _
    $region11: #{tpu_custom_call.1} parent=1 // pred_check_branch
      %54 = sbr.rel (0) target = $region13
    $region12: #{tpu_custom_call.1} parent=1 // pred_region
      %s56 = ssub.s32 16, 16
      %57 = vsyncadd [#allocation4], %s56
      %60 = dma.smem_to_hbm [#allocation5], 16, %s1, [#allocation4]
    $region13: #{tpu_custom_call.1} parent=1 // pred_fallthru
      _
    // Predicated region
    $region14: #{tpu_custom_call.1} parent=1 // pred_check
      _
    $region15: #{tpu_custom_call.1} parent=1 // pred_check_branch
      %62 = sbr.rel (0) target = $region17
    $region16: #{tpu_custom_call.1} parent=1 // pred_region
      %63 = dma.done [#allocation4], 16
    $region17: #{tpu_custom_call.1} parent=1 // pred_fallthru
      _
    %64 = sfence
    %65 = vsyncpa [#allocation3], 1
    %66 = vsyncpa [#allocation4], 1

</llo_original>
